<compile_context>
chip_gen: v6e
topology: v6e:2x2x1
jax: 0.10.0
libtpu: 0.0.40
codegen_flags: <defaults>
</compile_context>

<pallas_src>
import functools

import jax
import jax.numpy as jnp
from jax.experimental import pallas as pl
from jax.experimental.pallas import tpu as pltpu


def _embed_kernel(*refs, with_dropout: bool):
    if with_dropout:
        idx_ref, tab_ref, mask_ref, o_ref = refs
    else:
        idx_ref, tab_ref, o_ref = refs

    idx = idx_ref[...]                       # (RB, 2*PACK) int32, offsets pre-added
    rb = idx.shape[0]
    n_rows = tab_ref.shape[0]                # PACK * (Vt + Vv)

    # Multi-hot selector: each output row gathers PACK tokens (type row +
    # value row each) with a single MXU matmul against the block-diagonal
    # table, producing a lane-dense (RB, PACK*E) tile.
    iota = jax.lax.broadcasted_iota(jnp.int32, (rb, n_rows), 1)
    hot = jnp.zeros((rb, n_rows), jnp.float32)
    for k in range(idx.shape[1]):            # unrolled: 2*PACK compares + adds (VPU)
        hot = hot + (iota == idx[:, k:k + 1]).astype(jnp.float32)

    x = jnp.dot(hot, tab_ref[...], preferred_element_type=jnp.float32)

    if with_dropout:
        x = x * mask_ref[...]                # precomputed keep * 1/(1-p) mask

    o_ref[...] = x.astype(o_ref.dtype)


def _pick_row_block(nq: int, target: int = 1024) -> int:
    """Largest 8-aligned divisor of nq that is <= target; whole array if small."""
    if nq <= target:
        return nq
    for d in range(target, 0, -1):
        if nq % d == 0 and d % 8 == 0:
            return d
    return nq  # no aligned divisor: fall back to a single block


def sol_embedding_forward(t, v, type_table, value_table, *,
                          dropout_p: float, training: bool, seed: int = 0,
                          row_block: int | None = None):
    """t, v: (B, S) integer indices.  Returns (B, S, E) float32."""
    B, S = t.shape
    N = B * S
    Vt, E = type_table.shape
    Vv, Ev = value_table.shape
    assert Ev == E
    Vc = Vt + Vv

    # Lane-dense packing: PACK tokens per 128-lane output row (falls back to 1).
    PACK = (128 // E) if (128 % E == 0 and N % max(1, 128 // E) == 0) else 1
    Nq = N // PACK
    EW = PACK * E

    # Fused + block-diagonal table: (PACK*Vc, PACK*E).
    ctable = jnp.concatenate([type_table, value_table], axis=0).astype(jnp.float32)
    big_table = jnp.kron(jnp.eye(PACK, dtype=jnp.float32), ctable)
    # TODO(synk): for very large vocab/E the resident-table BlockSpec will not fit
    # v7x's 64 MiB VMEM; switch the table spec to memory_space=pl.ANY + manual DMA.

    # Indices: interleave (t, v+Vt) per token, PACK tokens per row, and pre-add
    # the per-token block offset j*Vc so the kernel only does compares.
    t_flat = t.reshape(N).astype(jnp.int32)
    v_flat = v.reshape(N).astype(jnp.int32) + Vt
    pairs = jnp.stack([t_flat, v_flat], axis=1)               # (N, 2)
    idx = pairs.reshape(Nq, 2 * PACK)
    offs = (jnp.arange(2 * PACK, dtype=jnp.int32) // 2) * Vc
    idx = idx + offs[None, :]

    if row_block is None:
        row_block = _pick_row_block(Nq)
    assert Nq % row_block == 0
    grid = (Nq // row_block,)

    with_dropout = bool(training) and dropout_p > 0.0

    in_specs = [
        pl.BlockSpec((row_block, 2 * PACK), lambda i: (i, 0)),   # packed indices
        pl.BlockSpec(big_table.shape, lambda i: (0, 0)),         # whole table resident
    ]
    args = [idx, big_table]
    if with_dropout:
        key = jax.random.PRNGKey(seed)
        keep = jax.random.bernoulli(key, p=1.0 - dropout_p, shape=(Nq, EW))
        mask = keep.astype(jnp.float32) * (1.0 / (1.0 - dropout_p))
        in_specs.append(pl.BlockSpec((row_block, EW), lambda i: (i, 0)))
        args.append(mask)

    out = pl.pallas_call(
        functools.partial(_embed_kernel, with_dropout=with_dropout),
        out_shape=jax.ShapeDtypeStruct((Nq, EW), jnp.float32),
        grid=grid,
        in_specs=in_specs,
        out_specs=pl.BlockSpec((row_block, EW), lambda i: (i, 0)),
        compiler_params=pltpu.CompilerParams(
            dimension_semantics=("parallel",)),
    )(*args)

    return out.reshape(B, S, E)


if __name__ == "__main__":
    # Module hyper-parameters (small, consistent with the PyTorch module)
    type_vocab_size = 16
    value_vocab_size = 32
    embed_size = 32
    pad_idx = 0
    dropout_p = 0.1

    B, S = 2, 16   # batch, sequence length -> N = 32 tokens

    key = jax.random.PRNGKey(0)
    k1, k2, k3, k4 = jax.random.split(key, 4)

    # Deterministic parameter init (nn.Embedding default: N(0,1), pad row zeroed).
    type_table = jax.random.normal(k1, (type_vocab_size, embed_size), jnp.float32)
    type_table = type_table.at[pad_idx].set(0.0)
    value_table = jax.random.normal(k2, (value_vocab_size, embed_size), jnp.float32)
    value_table = value_table.at[pad_idx].set(0.0)

    # Example inputs (include some padding indices).
    t = jax.random.randint(k3, (B, S), 0, type_vocab_size, dtype=jnp.int32)
    v = jax.random.randint(k4, (B, S), 0, value_vocab_size, dtype=jnp.int32)
    t = t.at[:, -2:].set(pad_idx)
    v = v.at[:, -2:].set(pad_idx)

    ref = jnp.take(type_table, t, axis=0) + jnp.take(value_table, v, axis=0)

    # Eval-mode forward (dropout is identity) -> deterministic, check vs reference.
    out_eval = sol_embedding_forward(t, v, type_table, value_table,
                                     dropout_p=dropout_p, training=False)
    jax.block_until_ready(out_eval)
    assert out_eval.shape == (B, S, embed_size)
    assert jnp.allclose(out_eval, ref, atol=1e-5, rtol=1e-5), "mismatch vs reference"

    # Training-mode forward (inverted dropout, mask fused into the kernel).
    out_train = sol_embedding_forward(t, v, type_table, value_table,
                                      dropout_p=dropout_p, training=True, seed=123)
    jax.block_until_ready(out_train)
    assert out_train.shape == (B, S, embed_size)
    scale = 1.0 / (1.0 - dropout_p)
    dropped = jnp.isclose(out_train, 0.0, atol=1e-6)
    kept = jnp.isclose(out_train, ref * scale, atol=1e-4, rtol=1e-4)
    assert bool(jnp.all(dropped | kept)), "dropout output inconsistent with inverted dropout"

    print("KERNEL_OK")
</pallas_src>

<mosaic_0001>
module attributes {stable_mosaic.version = 11 : i64} {
  func.func @_embed_kernel(%arg0: i32, %arg1: memref<8x8xi32, #tpu.memory_space<vmem>>, %arg2: memref<192x128xf32, #tpu.memory_space<vmem>>, %arg3: memref<8x128xf32, #tpu.memory_space<vmem>>) attributes {dimension_semantics = [#tpu.dimension_semantics<parallel>], iteration_bounds = array<i64: 1>, scalar_prefetch = 0 : i64, scratch_operands = 0 : i64, tpu.core_type = #tpu.core_type<tc>, window_params = [{transform_indices = @transform_0, window_bounds = array<i64: 8, 8>}, {pipeline_mode = #tpu.pipeline_mode<synchronous>, transform_indices = @transform_1, window_bounds = array<i64: 192, 128>}, {transform_indices = @transform_2, window_bounds = array<i64: 8, 128>}]} {
    %c0 = arith.constant 0 : index
    %c0_0 = arith.constant 0 : index
    %0 = vector.load %arg1[%c0, %c0_0] : memref<8x8xi32, #tpu.memory_space<vmem>>, vector<8x8xi32>
    %1 = tpu.iota {dimensions = array<i32: 1>} : vector<8x192xi32>
    %cst = arith.constant 0.000000e+00 : f32
    %2 = vector.broadcast %cst : f32 to vector<8x192xf32>
    %3 = vector.extract_strided_slice %0 {offsets = [0, 0], sizes = [8, 1], strides = [1, 1]} : vector<8x8xi32> to vector<8x1xi32>
    %4 = vector.broadcast %3 : vector<8x1xi32> to vector<8x192xi32>
    %5 = arith.cmpi eq, %1, %4 : vector<8x192xi32>
    %6 = arith.extui %5 : vector<8x192xi1> to vector<8x192xi32>
    %7 = arith.sitofp %6 : vector<8x192xi32> to vector<8x192xf32>
    %8 = arith.addf %2, %7 : vector<8x192xf32>
    %9 = vector.extract_strided_slice %0 {offsets = [0, 1], sizes = [8, 1], strides = [1, 1]} : vector<8x8xi32> to vector<8x1xi32>
    %10 = vector.broadcast %9 : vector<8x1xi32> to vector<8x192xi32>
    %11 = arith.cmpi eq, %1, %10 : vector<8x192xi32>
    %12 = arith.extui %11 : vector<8x192xi1> to vector<8x192xi32>
    %13 = arith.sitofp %12 : vector<8x192xi32> to vector<8x192xf32>
    %14 = arith.addf %8, %13 : vector<8x192xf32>
    %15 = vector.extract_strided_slice %0 {offsets = [0, 2], sizes = [8, 1], strides = [1, 1]} : vector<8x8xi32> to vector<8x1xi32>
    %16 = vector.broadcast %15 : vector<8x1xi32> to vector<8x192xi32>
    %17 = arith.cmpi eq, %1, %16 : vector<8x192xi32>
    %18 = arith.extui %17 : vector<8x192xi1> to vector<8x192xi32>
    %19 = arith.sitofp %18 : vector<8x192xi32> to vector<8x192xf32>
    %20 = arith.addf %14, %19 : vector<8x192xf32>
    %21 = vector.extract_strided_slice %0 {offsets = [0, 3], sizes = [8, 1], strides = [1, 1]} : vector<8x8xi32> to vector<8x1xi32>
    %22 = vector.broadcast %21 : vector<8x1xi32> to vector<8x192xi32>
    %23 = arith.cmpi eq, %1, %22 : vector<8x192xi32>
    %24 = arith.extui %23 : vector<8x192xi1> to vector<8x192xi32>
    %25 = arith.sitofp %24 : vector<8x192xi32> to vector<8x192xf32>
    %26 = arith.addf %20, %25 : vector<8x192xf32>
    %27 = vector.extract_strided_slice %0 {offsets = [0, 4], sizes = [8, 1], strides = [1, 1]} : vector<8x8xi32> to vector<8x1xi32>
    %28 = vector.broadcast %27 : vector<8x1xi32> to vector<8x192xi32>
    %29 = arith.cmpi eq, %1, %28 : vector<8x192xi32>
    %30 = arith.extui %29 : vector<8x192xi1> to vector<8x192xi32>
    %31 = arith.sitofp %30 : vector<8x192xi32> to vector<8x192xf32>
    %32 = arith.addf %26, %31 : vector<8x192xf32>
    %33 = vector.extract_strided_slice %0 {offsets = [0, 5], sizes = [8, 1], strides = [1, 1]} : vector<8x8xi32> to vector<8x1xi32>
    %34 = vector.broadcast %33 : vector<8x1xi32> to vector<8x192xi32>
    %35 = arith.cmpi eq, %1, %34 : vector<8x192xi32>
    %36 = arith.extui %35 : vector<8x192xi1> to vector<8x192xi32>
    %37 = arith.sitofp %36 : vector<8x192xi32> to vector<8x192xf32>
    %38 = arith.addf %32, %37 : vector<8x192xf32>
    %39 = vector.extract_strided_slice %0 {offsets = [0, 6], sizes = [8, 1], strides = [1, 1]} : vector<8x8xi32> to vector<8x1xi32>
    %40 = vector.broadcast %39 : vector<8x1xi32> to vector<8x192xi32>
    %41 = arith.cmpi eq, %1, %40 : vector<8x192xi32>
    %42 = arith.extui %41 : vector<8x192xi1> to vector<8x192xi32>
    %43 = arith.sitofp %42 : vector<8x192xi32> to vector<8x192xf32>
    %44 = arith.addf %38, %43 : vector<8x192xf32>
    %45 = vector.extract_strided_slice %0 {offsets = [0, 7], sizes = [8, 1], strides = [1, 1]} : vector<8x8xi32> to vector<8x1xi32>
    %46 = vector.broadcast %45 : vector<8x1xi32> to vector<8x192xi32>
    %47 = arith.cmpi eq, %1, %46 : vector<8x192xi32>
    %48 = arith.extui %47 : vector<8x192xi1> to vector<8x192xi32>
    %49 = arith.sitofp %48 : vector<8x192xi32> to vector<8x192xf32>
    %50 = arith.addf %44, %49 : vector<8x192xf32>
    %c0_1 = arith.constant 0 : index
    %c0_2 = arith.constant 0 : index
    %51 = vector.load %arg2[%c0_1, %c0_2] : memref<192x128xf32, #tpu.memory_space<vmem>>, vector<192x128xf32>
    %cst_3 = arith.constant dense<0.000000e+00> : vector<8x128xf32>
    %52 = tpu.matmul %50, %51, %cst_3 {dimension_numbers = #tpu.dot_dimension_numbers<[1], [0], [0], [1], [0, 0, 1, 1], [], []>} : vector<8x192xf32>, vector<192x128xf32>, vector<8x128xf32> -> vector<8x128xf32>
    %c0_4 = arith.constant 0 : index
    %c0_5 = arith.constant 0 : index
    %53 = vector.load %arg3[%c0_4, %c0_5] : memref<8x128xf32, #tpu.memory_space<vmem>>, vector<8x128xf32>
    tpu.vector_store %arg3[%c0_4, %c0_5], %52 {strides = array<i32>} : memref<8x128xf32, #tpu.memory_space<vmem>>, vector<8x128xf32>,
    return
  }
  func.func @transform_0(%arg0: i32) -> (i32, i32) {
    %c0_i32 = arith.constant 0 : i32
    %c0_i32_0 = arith.constant 0 : i32
    return %arg0, %c0_i32 : i32, i32
  }
  func.func @transform_1(%arg0: i32) -> (i32, i32) {
    %c0_i32 = arith.constant 0 : i32
    %c0_i32_0 = arith.constant 0 : i32
    %c0_i32_1 = arith.constant 0 : i32
    return %c0_i32, %c0_i32_0 : i32, i32
  }
  func.func @transform_2(%arg0: i32) -> (i32, i32) {
    %c0_i32 = arith.constant 0 : i32
    %c0_i32_0 = arith.constant 0 : i32
    return %arg0, %c0_i32 : i32, i32
  }
}

</mosaic_0001>

<llo_original>
// kernel: tpu_custom_call.1
$region0: #{tpu_custom_call.1}
  #allocation0 [shape = 'u32[]', space=smem, size = 0x4, offset = 0x4, fixed_abs, tag = 'smem constant byte address 0x4 - core index']
  #allocation1 [shape = 'u32[144,128]{1,0:T(1,128)}', space=vmem, size = 0x12000, scoped, tag = 'internal scratch']
  %s0 = inlined_call_operand.hbm [shape: s32[8,8], index: 0, kind: input, shape index: {}]
  %s1 = inlined_call_operand.hbm [shape: f32[192,128], index: 1, kind: input, shape index: {}]
  %s2 = inlined_call_operand.hbm [shape: f32[8,128], index: 2, kind: output, shape index: {}]
  %s3 = sld [smem:[#allocation0]]
  $region26: #{tpu_custom_call.1} parent=0
    _
  %s5 = ssub.s32 1, %s3
  %s6 = scalar_select 0, %s5, %s3
  $region1: #{tpu_custom_call.1} parent=0
    #allocation2 [shape = 'u8[4096]{0}', space=vmem, size = 0x1000, scoped, tag = 'input window, operand 0, single buffered']
    #allocation3 [shape = 's32[1]{0}', space=sflag, size = 0x4, scoped, tag = 'scoped memory for tpu_custom_call.1']
    #allocation4 [shape = 's32[1]{0}', space=sflag, size = 0x4, scoped, tag = 'scoped memory for tpu_custom_call.1']
    #allocation5 [shape = 'u8[98304]{0}', space=vmem, size = 0x18000, scoped, tag = 'input window, operand 1, single buffered']
    #allocation6 [shape = 's32[1]{0}', space=sflag, size = 0x4, scoped, tag = 'scoped memory for tpu_custom_call.1']
    #allocation7 [shape = 'u8[4096]{0}', space=vmem, size = 0x1000, scoped, tag = 'output window, operand 0, single buffered']
    %7 = vsyncpa [#allocation3], 0
    %8 = vsyncpa [#allocation6], 0
    %9 = vsyncpa [#allocation4], 0
    // Predicated region
    $region2: #{tpu_custom_call.1} parent=1 // pred_check
      _
    $region3: #{tpu_custom_call.1} parent=1 // pred_check_branch
      %11 = sbr.rel (0) target = $region5
    $region4: #{tpu_custom_call.1} parent=1 // pred_region
      %s13 = ssub.s32 128, 128
      %14 = vsyncadd [#allocation3], %s13
      %s16 = sshll.u32 [#allocation2], 4
      %s17 = int_to_ptr.vmem [resolvable:$true] %s16
      %19 = dma.hbm_to_vmem [thread:$0]  %s0, 128, %s17, [#allocation3]
    $region5: #{tpu_custom_call.1} parent=1 // pred_fallthru
      _
    // Predicated region
    $region6: #{tpu_custom_call.1} parent=1 // pred_check
      _
    $region7: #{tpu_custom_call.1} parent=1 // pred_check_branch
      %21 = sbr.rel (0) target = $region9
    $region8: #{tpu_custom_call.1} parent=1 // pred_region
      %s23 = ssub.s32 3072, 3072
      %24 = vsyncadd [#allocation6], %s23
      %s25 = sshll.u32 [#allocation5], 4
      %s26 = int_to_ptr.vmem [resolvable:$true] %s25
      %31 = dma.hbm_to_vmem [thread:$0]  %s1, 3072, %s26, [#allocation6], 128, 128, 8
    $region9: #{tpu_custom_call.1} parent=1 // pred_fallthru
      _
    // Predicated region
    $region10: #{tpu_custom_call.1} parent=1 // pred_check
      _
    $region11: #{tpu_custom_call.1} parent=1 // pred_check_branch
      %33 = sbr.rel (0) target = $region13
    $region12: #{tpu_custom_call.1} parent=1 // pred_region
      %34 = dma.done [#allocation3], 128
    $region13: #{tpu_custom_call.1} parent=1 // pred_fallthru
      _
    // Predicated region
    $region14: #{tpu_custom_call.1} parent=1 // pred_check
      _
    $region15: #{tpu_custom_call.1} parent=1 // pred_check_branch
      %36 = sbr.rel (0) target = $region17
    $region16: #{tpu_custom_call.1} parent=1 // pred_region
      %37 = dma.done [#allocation6], 3072
    $region17: #{tpu_custom_call.1} parent=1 // pred_fallthru
      _
    %v38 = vld [vmem:[#allocation2] sm:$0xff]
    %v39 = vlaneseq
    %v40 = vand.u32 %v39, 127
    %v41 = vadd.s32 %v40, 128
    %42 = vset.pattern.permute.xlu0 0
    %43 = vperm.xlu0 %42, %v38
    %v44 = vpop.permute.xlu0 %43
    %vm45 = vcmp.eq.s32.totalorder %v40, %v44
    %vm46 = vcmp.eq.s32.totalorder %v41, %v44
    %v47 = vsel %vm45, 1, 0
    %v48 = vsel %vm46, 1, 0
    %v49 = vcvt.s32.f32 %v47
    %v50 = vcvt.s32.f32 %v48
    %v51 = vadd.f32 %v49, 0.0
    %v52 = vadd.f32 %v50, 0.0
    %53 = vset.pattern.permute.xlu0 1
    %54 = vperm.xlu0 %53, %v38
    %v55 = vpop.permute.xlu0 %54
    %vm56 = vcmp.eq.s32.totalorder %v40, %v55
    %vm57 = vcmp.eq.s32.totalorder %v41, %v55
    %v58 = vsel %vm56, 1, 0
    %v59 = vsel %vm57, 1, 0
    %v60 = vcvt.s32.f32 %v58
    %v61 = vcvt.s32.f32 %v59
    %v62 = vadd.f32 %v51, %v60
    %v63 = vadd.f32 %v52, %v61
    %64 = vset.pattern.permute.xlu0 2
    %65 = vperm.xlu0 %64, %v38
    %v66 = vpop.permute.xlu0 %65
    %vm67 = vcmp.eq.s32.totalorder %v40, %v66
    %vm68 = vcmp.eq.s32.totalorder %v41, %v66
    %v69 = vsel %vm67, 1, 0
    %v70 = vsel %vm68, 1, 0
    %v71 = vcvt.s32.f32 %v69
    %v72 = vcvt.s32.f32 %v70
    %v73 = vadd.f32 %v62, %v71
    %v74 = vadd.f32 %v63, %v72
    %75 = vset.pattern.permute.xlu0 3
    %76 = vperm.xlu0 %75, %v38
    %v77 = vpop.permute.xlu0 %76
    %vm78 = vcmp.eq.s32.totalorder %v40, %v77
    %vm79 = vcmp.eq.s32.totalorder %v41, %v77
    %v80 = vsel %vm78, 1, 0
    %v81 = vsel %vm79, 1, 0
    %v82 = vcvt.s32.f32 %v80
    %v83 = vcvt.s32.f32 %v81
    %v84 = vadd.f32 %v73, %v82
    %v85 = vadd.f32 %v74, %v83
    %86 = vset.pattern.permute.xlu0 4
    %87 = vperm.xlu0 %86, %v38
    %v88 = vpop.permute.xlu0 %87
    %vm89 = vcmp.eq.s32.totalorder %v40, %v88
    %vm90 = vcmp.eq.s32.totalorder %v41, %v88
    %v91 = vsel %vm89, 1, 0
    %v92 = vsel %vm90, 1, 0
    %v93 = vcvt.s32.f32 %v91
    %v94 = vcvt.s32.f32 %v92
    %v95 = vadd.f32 %v84, %v93
    %v96 = vadd.f32 %v85, %v94
    %97 = vset.pattern.permute.xlu0 5
    %98 = vperm.xlu0 %97, %v38
    %v99 = vpop.permute.xlu0 %98
    %vm100 = vcmp.eq.s32.totalorder %v40, %v99
    %vm101 = vcmp.eq.s32.totalorder %v41, %v99
    %v102 = vsel %vm100, 1, 0
    %v103 = vsel %vm101, 1, 0
    %v104 = vcvt.s32.f32 %v102
    %v105 = vcvt.s32.f32 %v103
    %v106 = vadd.f32 %v95, %v104
    %v107 = vadd.f32 %v96, %v105
    %108 = vset.pattern.permute.xlu0 6
    %109 = vperm.xlu0 %108, %v38
    %v110 = vpop.permute.xlu0 %109
    %vm111 = vcmp.eq.s32.totalorder %v40, %v110
    %vm112 = vcmp.eq.s32.totalorder %v41, %v110
    %v113 = vsel %vm111, 1, 0
    %v114 = vsel %vm112, 1, 0
    %v115 = vcvt.s32.f32 %v113
    %v116 = vcvt.s32.f32 %v114
    %v117 = vadd.f32 %v106, %v115
    %v118 = vadd.f32 %v107, %v116
    %119 = vset.pattern.permute.xlu0 7
    %120 = vperm.xlu0 %119, %v38
    %v121 = vpop.permute.xlu0 %120
    %vm122 = vcmp.eq.s32.totalorder %v40, %v121
    %vm123 = vcmp.eq.s32.totalorder %v41, %v121
    %v124 = vsel %vm122, 1, 0
    %v125 = vsel %vm123, 1, 0
    %v126 = vcvt.s32.f32 %v124
    %v127 = vcvt.s32.f32 %v125
    %v128 = vadd.f32 %v117, %v126
    %v129 = vadd.f32 %v118, %v127
    %v130 = vld [vmem:[#allocation5] sm:$0xff]
    %v131 = vld [vmem:[#allocation5 + $0x8] sm:$0xff]
    %v132 = vld [vmem:[#allocation5 + $0x10] sm:$0xff]
    %v133 = vld [vmem:[#allocation5 + $0x18] sm:$0xff]
    %v134 = vld [vmem:[#allocation5 + $0x20] sm:$0xff]
    %v135 = vld [vmem:[#allocation5 + $0x28] sm:$0xff]
    %v136 = vld [vmem:[#allocation5 + $0x30] sm:$0xff]
    %v137 = vld [vmem:[#allocation5 + $0x38] sm:$0xff]
    %v138 = vld [vmem:[#allocation5 + $0x40] sm:$0xff]
    %v139 = vld [vmem:[#allocation5 + $0x48] sm:$0xff]
    %v140 = vld [vmem:[#allocation5 + $0x50] sm:$0xff]
    %v141 = vld [vmem:[#allocation5 + $0x58] sm:$0xff]
    %v142 = vld [vmem:[#allocation5 + $0x60] sm:$0xff]
    %v143 = vld [vmem:[#allocation5 + $0x68] sm:$0xff]
    %v144 = vld [vmem:[#allocation5 + $0x70] sm:$0xff]
    %v145 = vld [vmem:[#allocation5 + $0x78] sm:$0xff]
    %v146 = vld [vmem:[#allocation5 + $0x80] sm:$0xff]
    %v147 = vld [vmem:[#allocation5 + $0x88] sm:$0xff]
    %v148 = vld [vmem:[#allocation5 + $0x90] sm:$0xff]
    %v149 = vld [vmem:[#allocation5 + $0x98] sm:$0xff]
    %v150 = vld [vmem:[#allocation5 + $0xa0] sm:$0xff]
    %v151 = vld [vmem:[#allocation5 + $0xa8] sm:$0xff]
    %v152 = vld [vmem:[#allocation5 + $0xb0] sm:$0xff]
    %v153 = vld [vmem:[#allocation5 + $0xb8] sm:$0xff]
    %vm154 = vcmask 523264
    %v156 = vsel %vm154, %v129, 0
    %158 = vmatprep.subr.mxu0 0.0
    %159 = vmatpush1.msra.mxu0 %v145
    %160 = vmatprep.subr.mxu0 0.0
    %161 = vmatpush1.msra.mxu0 %v144
    %162 = vmatprep.subr.mxu0 0.0
    %163 = vmatpush1.msra.mxu0 %v143
    %164 = vmatprep.subr.mxu0 0.0
    %165 = vmatpush1.msra.mxu0 %v142
    %166 = vmatprep.subr.mxu0 0.0
    %167 = vmatpush1.msra.mxu0 %v141
    %168 = vmatprep.subr.mxu0 0.0
    %169 = vmatpush1.msra.mxu0 %v140
    %170 = vmatprep.subr.mxu0 0.0
    %171 = vmatpush1.msra.mxu0 %v139
    %172 = vmatprep.subr.mxu0 0.0
    %173 = vmatpush1.msra.mxu0 %v138
    %174 = vmatprep.subr.mxu0 0.0
    %175 = vmatpush1.msra.mxu0 %v137
    %176 = vmatprep.subr.mxu0 0.0
    %177 = vmatpush1.msra.mxu0 %v136
    %178 = vmatprep.subr.mxu0 0.0
    %179 = vmatpush1.msra.mxu0 %v135
    %180 = vmatprep.subr.mxu0 0.0
    %181 = vmatpush1.msra.mxu0 %v134
    %182 = vmatprep.subr.mxu0 0.0
    %183 = vmatpush1.msra.mxu0 %v133
    %184 = vmatprep.subr.mxu0 0.0
    %185 = vmatpush1.msra.mxu0 %v132
    %186 = vmatprep.subr.mxu0 0.0
    %187 = vmatpush1.msra.mxu0 %v131
    %188 = vmatprep.subr.mxu0 0.0
    %189 = vmatpush1.msra.mxu0 %v130
    %190 = vmatprep.subr.mxu0 0.0
    %191 = vmatpush2.msra.mxu0 0.0
    %192 = vmatprep.subr.mxu0 0.0
    %193 = vmatpush2.msra.mxu0 0.0
    %194 = vmatprep.subr.mxu0 0.0
    %195 = vmatpush2.msra.mxu0 0.0
    %196 = vmatprep.subr.mxu0 0.0
    %197 = vmatpush2.msra.mxu0 0.0
    %198 = vmatprep.subr.mxu0 0.0
    %199 = vmatpush2.msra.mxu0 0.0
    %200 = vmatprep.subr.mxu0 0.0
    %201 = vmatpush2.msra.mxu0 0.0
    %202 = vmatprep.subr.mxu0 0.0
    %203 = vmatpush2.msra.mxu0 0.0
    %204 = vmatprep.subr.mxu0 0.0
    %205 = vmatpush2.msra.mxu0 0.0
    %206 = vmatprep.subr.mxu0 0.0
    %207 = vmatpush2.msra.mxu0 %v153
    %208 = vmatprep.subr.mxu0 0.0
    %209 = vmatpush2.msra.mxu0 %v152
    %210 = vmatprep.subr.mxu0 0.0
    %211 = vmatpush2.msra.mxu0 %v151
    %212 = vmatprep.subr.mxu0 0.0
    %213 = vmatpush2.msra.mxu0 %v150
    %214 = vmatprep.subr.mxu0 0.0
    %215 = vmatpush2.msra.mxu0 %v149
    %216 = vmatprep.subr.mxu0 0.0
    %217 = vmatpush2.msra.mxu0 %v148
    %218 = vmatprep.subr.mxu0 0.0
    %219 = vmatpush2.msra.mxu0 %v147
    %220 = vmatprep.subr.mxu0 0.0
    %221 = vmatpush2.msra.mxu0 %v146
    %222 = vmatprep.mubr.f32.mxu0 %v156
    %223 = vmatmul.mubr.f32.gmra.mxu0 %v128
    %v224 = vpop.f32.mrf.mxu0
    %v225 = vadd.f32 0.0, %v224
    %v226 = vpop.f32.mrf.mxu0
    %227 = vdwg.mxu0
    %228 = vst [vmem:[#allocation7] sm:$0xff] %v225
    // Predicated region
    $region18: #{tpu_custom_call.1} parent=1 // pred_check
      _
    $region19: #{tpu_custom_call.1} parent=1 // pred_check_branch
      %230 = sbr.rel (0) target = $region21
    $region20: #{tpu_custom_call.1} parent=1 // pred_region
      %s232 = ssub.s32 128, 128
      %233 = vsyncadd [#allocation4], %s232
      %s235 = sshll.u32 [#allocation7], 4
      %s236 = int_to_ptr.vmem [resolvable:$true] %s235
      %238 = dma.vmem_to_hbm [thread:$0]  %s236, 128, %s2, [#allocation4]
    $region21: #{tpu_custom_call.1} parent=1 // pred_fallthru
      _
    // Predicated region
    $region22: #{tpu_custom_call.1} parent=1 // pred_check
      _
    $region23: #{tpu_custom_call.1} parent=1 // pred_check_branch
      %240 = sbr.rel (0) target = $region25
    $region24: #{tpu_custom_call.1} parent=1 // pred_region
      %241 = dma.done [#allocation4], 128
    $region25: #{tpu_custom_call.1} parent=1 // pred_fallthru
      _
    %242 = vsyncpa [#allocation3], 1
    %243 = vsyncpa [#allocation6], 1
    %244 = vsyncpa [#allocation4], 1

</llo_original>
